<compile_context>
chip_gen: v7x
topology: tpu7x:2x2x1
jax: 0.10.0
libtpu: 0.0.40
codegen_flags: <defaults>
</compile_context>

<pallas_src>
import jax
import jax.numpy as jnp
from jax import lax
from jax.experimental import pallas as pl
from jax.experimental.pallas import tpu as pltpu


def _round_up(x, m):
    return ((x + m - 1) // m) * m


def _unpool_kernel(idx_ref, x_ref, o_ref):
    """One-hot scatter via MXU matmul.

    idx_ref : VMEM (1, 1, k) int32   -- pooling indices for this batch element
    x_ref   : VMEM (1, k, F)         -- pooled node features for this batch element
    o_ref   : VMEM (1, N, F)         -- full node features (scattered; rest zero)
    """
    N = o_ref.shape[1]
    k = x_ref.shape[1]

    idx_row = idx_ref[0]                                        # (1, k) int32
    node_ids = lax.broadcasted_iota(jnp.int32, (N, k), 0)       # (N, k)
    one_hot = (node_ids == idx_row).astype(x_ref.dtype)         # (N, k)

    # One dense MXU matmul replaces k masked dynamic-sublane stores and the zero-init.
    o_ref[0] = jnp.dot(
        one_hot, x_ref[0], preferred_element_type=jnp.float32
    ).astype(o_ref.dtype)


def graph_unpool(A, X, idx_batch):
    """JAX/Pallas equivalent of GraphUnpool.forward(A, X, idx_batch)."""
    batch, k, F = X.shape
    N = A.shape[1]

    # Pad to TPU-friendly tiles: sublane (8) on node dims, lanes (128) on features.
    k_pad = _round_up(k, 8)
    N_pad = _round_up(N, 8)
    F_pad = _round_up(F, 128)

    if (k_pad, F_pad) != (k, F):
        X_p = jnp.zeros((batch, k_pad, F_pad), X.dtype).at[:, :k, :F].set(X)
    else:
        X_p = X
    # Padded idx entries are 0; their X rows are zero, so they contribute nothing.
    idx_p = (
        jnp.zeros((batch, 1, k_pad), jnp.int32)
        .at[:, 0, :k]
        .set(idx_batch.astype(jnp.int32))
    )

    new_X_p = pl.pallas_call(
        _unpool_kernel,
        out_shape=jax.ShapeDtypeStruct((batch, N_pad, F_pad), X.dtype),
        grid=(batch,),
        in_specs=[
            pl.BlockSpec((1, 1, k_pad), lambda b: (b, 0, 0)),      # idx (VMEM)
            pl.BlockSpec((1, k_pad, F_pad), lambda b: (b, 0, 0)),  # X
        ],
        out_specs=pl.BlockSpec((1, N_pad, F_pad), lambda b: (b, 0, 0)),
        compiler_params=pltpu.CompilerParams(
            dimension_semantics=("parallel",),   # batch elements are independent
        ),
    )(idx_p, X_p)

    new_X = new_X_p[:, :N, :F]
    return A, new_X


if __name__ == "__main__":
    key = jax.random.PRNGKey(0)
    k_a, k_x, k_i0, k_i1 = jax.random.split(key, 4)

    batch, N, k, F = 2, 16, 8, 32

    A = jax.random.normal(k_a, (batch, N, N), dtype=jnp.float32)
    X = jax.random.normal(k_x, (batch, k, F), dtype=jnp.float32)
    # unique pooling indices per batch element (as produced by a graph top-k pool)
    idx0 = jax.random.permutation(k_i0, N)[:k]
    idx1 = jax.random.permutation(k_i1, N)[:k]
    idx_batch = jnp.stack([idx0, idx1], axis=0).astype(jnp.int32)

    A_out, new_X = graph_unpool(A, X, idx_batch)
    jax.block_until_ready(new_X)

    # reference check (plain JAX scatter)
    ref = jnp.zeros((batch, N, F), dtype=X.dtype)
    ref = ref.at[jnp.arange(batch)[:, None], idx_batch].set(X)

    assert A_out.shape == (batch, N, N)
    assert new_X.shape == (batch, N, F)
    assert jnp.allclose(A_out, A)
    assert jnp.allclose(new_X, ref), "scatter mismatch vs reference"

    print("KERNEL_OK")
</pallas_src>

<mosaic_0001>
module attributes {stable_mosaic.version = 11 : i64} {
  func.func @_unpool_kernel(%arg0: i32, %arg1: memref<1x1x8xi32, #tpu.memory_space<vmem>>, %arg2: memref<1x8x128xf32, #tpu.memory_space<vmem>>, %arg3: memref<1x16x128xf32, #tpu.memory_space<vmem>>) attributes {dimension_semantics = [#tpu.dimension_semantics<parallel>], iteration_bounds = array<i64: 2>, scalar_prefetch = 0 : i64, scratch_operands = 0 : i64, tpu.core_type = #tpu.core_type<tc>, window_params = [{transform_indices = @transform_0, window_bounds = array<i64: 1, 1, 8>}, {transform_indices = @transform_1, window_bounds = array<i64: 1, 8, 128>}, {transform_indices = @transform_2, window_bounds = array<i64: 1, 16, 128>}]} {
    %c0 = arith.constant 0 : index
    %c0_0 = arith.constant 0 : index
    %c0_1 = arith.constant 0 : index
    %0 = vector.load %arg1[%c0, %c0_0, %c0_1] : memref<1x1x8xi32, #tpu.memory_space<vmem>>, vector<1x1x8xi32>
    %1 = vector.shape_cast %0 : vector<1x1x8xi32> to vector<1x8xi32>
    %2 = tpu.iota {dimensions = array<i32: 0>} : vector<16x8xi32>
    %3 = vector.broadcast %1 : vector<1x8xi32> to vector<16x8xi32>
    %4 = arith.cmpi eq, %2, %3 : vector<16x8xi32>
    %5 = arith.extui %4 : vector<16x8xi1> to vector<16x8xi32>
    %6 = arith.sitofp %5 : vector<16x8xi32> to vector<16x8xf32>
    %c0_2 = arith.constant 0 : index
    %c0_3 = arith.constant 0 : index
    %c0_4 = arith.constant 0 : index
    %7 = vector.load %arg2[%c0_2, %c0_3, %c0_4] : memref<1x8x128xf32, #tpu.memory_space<vmem>>, vector<1x8x128xf32>
    %8 = vector.shape_cast %7 : vector<1x8x128xf32> to vector<8x128xf32>
    %cst = arith.constant dense<0.000000e+00> : vector<16x128xf32>
    %9 = tpu.matmul %6, %8, %cst {dimension_numbers = #tpu.dot_dimension_numbers<[1], [0], [0], [1], [0, 0, 1, 1], [], []>} : vector<16x8xf32>, vector<8x128xf32>, vector<16x128xf32> -> vector<16x128xf32>
    %c0_5 = arith.constant 0 : index
    %c0_6 = arith.constant 0 : index
    %c0_7 = arith.constant 0 : index
    %10 = vector.load %arg3[%c0_5, %c0_6, %c0_7] : memref<1x16x128xf32, #tpu.memory_space<vmem>>, vector<1x16x128xf32>
    %11 = vector.shape_cast %10 : vector<1x16x128xf32> to vector<16x128xf32>
    %12 = vector.shape_cast %9 : vector<16x128xf32> to vector<1x16x128xf32>
    tpu.vector_store %arg3[%c0_5, %c0_6, %c0_7], %12 {strides = array<i32>} : memref<1x16x128xf32, #tpu.memory_space<vmem>>, vector<1x16x128xf32>,
    return
  }
  func.func @transform_0(%arg0: i32) -> (i32, i32, i32) {
    %c0_i32 = arith.constant 0 : i32
    %c0_i32_0 = arith.constant 0 : i32
    %c0_i32_1 = arith.constant 0 : i32
    return %arg0, %c0_i32, %c0_i32_0 : i32, i32, i32
  }
  func.func @transform_1(%arg0: i32) -> (i32, i32, i32) {
    %c0_i32 = arith.constant 0 : i32
    %c0_i32_0 = arith.constant 0 : i32
    %c0_i32_1 = arith.constant 0 : i32
    return %arg0, %c0_i32, %c0_i32_0 : i32, i32, i32
  }
  func.func @transform_2(%arg0: i32) -> (i32, i32, i32) {
    %c0_i32 = arith.constant 0 : i32
    %c0_i32_0 = arith.constant 0 : i32
    %c0_i32_1 = arith.constant 0 : i32
    return %arg0, %c0_i32, %c0_i32_0 : i32, i32, i32
  }
}

</mosaic_0001>

<llo_original>
// kernel: tpu_custom_call.1
$region0: #{tpu_custom_call.1}
  #allocation0 [shape = 'u32[]', space=smem, size = 0x4, offset = 0x4, fixed_abs, tag = 'smem constant byte address 0x4 - core index']
  #allocation1 [shape = 'u32[144,128]{1,0:T(1,128)}', space=vmem, size = 0x12000, scoped, tag = 'internal scratch']
  %s0 = inlined_call_operand.hbm [shape: s32[2,1,8], index: 0, kind: input, shape index: {}]
  %s1 = inlined_call_operand.hbm [shape: f32[2,8,128], index: 1, kind: input, shape index: {}]
  %s2 = inlined_call_operand.hbm [shape: f32[2,16,128], index: 2, kind: output, shape index: {}]
  %s3 = sld [smem:[#allocation0]]
  $region49: #{tpu_custom_call.1} parent=0
    _
  %s5 = ssub.s32 1, %s3
  %s6 = scalar_select 0, %s5, %s3
  $region1: #{tpu_custom_call.1} parent=0
    #allocation2 [shape = 'u8[1024]{0}', space=vmem, size = 0x400, scoped, tag = 'input window, operand 0']
    #allocation3 [shape = 's32[2]{0}', space=sflag, size = 0x8, scoped, tag = 'scoped memory for tpu_custom_call.1']
    #allocation4 [shape = 's32[2]{0}', space=sflag, size = 0x8, scoped, tag = 'scoped memory for tpu_custom_call.1']
    #allocation5 [shape = 'u8[8192]{0}', space=vmem, size = 0x2000, scoped, tag = 'input window, operand 1']
    #allocation6 [shape = 's32[2]{0}', space=sflag, size = 0x8, scoped, tag = 'scoped memory for tpu_custom_call.1']
    #allocation7 [shape = 'u8[16384]{0}', space=vmem, size = 0x4000, scoped, tag = 'output window, operand 0']
    %7 = vsyncpa [#allocation3], 0
    %s8 = scalar_lea.sflag [#allocation3], 1
    %9 = vsyncpa %s8, 0
    %10 = vsyncpa [#allocation6], 0
    %s11 = scalar_lea.sflag [#allocation6], 1
    %12 = vsyncpa %s11, 0
    %13 = vsyncpa [#allocation4], 0
    %s14 = scalar_lea.sflag [#allocation4], 1
    %15 = vsyncpa %s14, 0
    loop: start=0, step=1, limit=4
    $region2: #{tpu_custom_call.1} parent=1 // loop_pre_header
      _
    $region3: #{tpu_custom_call.1} parent=1 // loop_header
      %s17 = sphi 0, %s21
      %p18 = scmp.ge.s32.totalorder %s17, 4
      %s27 = sphi 0, %s29
      %s30 = sphi 0, %s27
      %s31 = sphi 0, %s30
      %s47 = sphi 0, %s31
      %s53 = sphi 0, %s55
      %s56 = sphi 0, %s53
      %s57 = sphi 0, %s56
      %s73 = sphi 0, %s57
      %s79 = sphi 0, %s81
      %s82 = sphi 0, %s79
      %s83 = sphi 0, %s82
      %s99 = sphi 0, %s83
    $region4: #{tpu_custom_call.1} parent=1 // loop_header_branch
      %20 = sbr.rel (%p18) target = $region8
    $region5: #{tpu_custom_call.1} parent=1 // loop_body
      %s22 = ssub.s32 %s17, 1
      %s23 = ssub.s32 %s17, 2
      %s24 = sadd.s32 %s17, 1
      %s25 = ssub.s32 %s17, %s24
      %p26 = scmp.eq.s32.totalorder %s25, 0
      %s28 = sadd.s32 %s27, 1
      %s29 = scalar_select %p26, %s27, %s28
      %p32 = pneg %p26
      %p33 = scmp.eq.s32.totalorder %s17, 1
      %p34 = por %p32, %p33
      %p35 = scmp.ne.s32.totalorder %s27, %s30
      %p36 = scmp.eq.s32.totalorder %s17, 0
      %p37 = por %p35, %p36
      %p38 = scmp.ne.s32.totalorder %s27, %s30
      %p39 = scmp.eq.s32.totalorder %s22, 1
      %p40 = por %p38, %p39
      %p41 = scmp.ne.s32.totalorder %s30, %s31
      %p42 = scmp.eq.s32.totalorder %s22, 0
      %p43 = por %p41, %p42
      %p44 = scmp.ne.s32.totalorder %s30, %s31
      %p45 = scmp.eq.s32.totalorder %s23, 1
      %p46 = por %p44, %p45
      %p48 = scmp.ne.s32.totalorder %s31, %s47
      %p49 = scmp.eq.s32.totalorder %s23, 0
      %p50 = por %p48, %p49
      %s51 = ssub.s32 %s17, %s24
      %p52 = scmp.eq.s32.totalorder %s51, 0
      %s54 = sadd.s32 %s53, 1
      %s55 = scalar_select %p52, %s53, %s54
      %p58 = pneg %p52
      %p59 = scmp.eq.s32.totalorder %s17, 1
      %p60 = por %p58, %p59
      %p61 = scmp.ne.s32.totalorder %s53, %s56
      %p62 = scmp.eq.s32.totalorder %s17, 0
      %p63 = por %p61, %p62
      %p64 = scmp.ne.s32.totalorder %s53, %s56
      %p65 = scmp.eq.s32.totalorder %s22, 1
      %p66 = por %p64, %p65
      %p67 = scmp.ne.s32.totalorder %s56, %s57
      %p68 = scmp.eq.s32.totalorder %s22, 0
      %p69 = por %p67, %p68
      %p70 = scmp.ne.s32.totalorder %s56, %s57
      %p71 = scmp.eq.s32.totalorder %s23, 1
      %p72 = por %p70, %p71
      %p74 = scmp.ne.s32.totalorder %s57, %s73
      %p75 = scmp.eq.s32.totalorder %s23, 0
      %p76 = por %p74, %p75
      %s77 = ssub.s32 %s17, %s24
      %p78 = scmp.eq.s32.totalorder %s77, 0
      %s80 = sadd.s32 %s79, 1
      %s81 = scalar_select %p78, %s79, %s80
      %p84 = pneg %p78
      %p85 = scmp.eq.s32.totalorder %s17, 1
      %p86 = por %p84, %p85
      %p87 = scmp.ne.s32.totalorder %s79, %s82
      %p88 = scmp.eq.s32.totalorder %s17, 0
      %p89 = por %p87, %p88
      %p90 = scmp.ne.s32.totalorder %s79, %s82
      %p91 = scmp.eq.s32.totalorder %s22, 1
      %p92 = por %p90, %p91
      %p93 = scmp.ne.s32.totalorder %s82, %s83
      %p94 = scmp.eq.s32.totalorder %s22, 0
      %p95 = por %p93, %p94
      %p96 = scmp.ne.s32.totalorder %s82, %s83
      %p97 = scmp.eq.s32.totalorder %s23, 1
      %p98 = por %p96, %p97
      %p100 = scmp.ne.s32.totalorder %s83, %s99
      %p101 = scmp.eq.s32.totalorder %s23, 0
      %p102 = por %p100, %p101
      %p103 = scmp.le.s32.totalorder 1, %s17
      %p104 = scmp.lt.s32.totalorder %s17, 3
      %p105 = pnand %p103, %p104
      %p106 = pneg %p105
      // Predicated region
      $region9: #{tpu_custom_call.1} parent=5 // pred_check
        _
      $region10: #{tpu_custom_call.1} parent=5 // pred_check_branch
        %108 = sbr.rel (%p105) target = $region12
      $region11: #{tpu_custom_call.1} parent=5 // pred_region
        %s109 = ssub.s32 %s17, 1
      $region12: #{tpu_custom_call.1} parent=5 // pred_fallthru
        _
      %p110 = scmp.lt.s32.totalorder %s17, 2
      // Predicated region
      $region13: #{tpu_custom_call.1} parent=5 // pred_check
        %p111 = pneg %p110
      $region14: #{tpu_custom_call.1} parent=5 // pred_check_branch
        %113 = sbr.rel (%p111) target = $region16
      $region15: #{tpu_custom_call.1} parent=5 // pred_region
        // Predicated region
        $region17: #{tpu_custom_call.1} parent=15 // pred_check
          %p114 = pneg %p37
        $region18: #{tpu_custom_call.1} parent=15 // pred_check_branch
          %116 = sbr.rel (%p114) target = $region20
        $region19: #{tpu_custom_call.1} parent=15 // pred_region
          %s117 = sand.u32 %s27, 1
          %s118 = scalar_lea.sflag [#allocation3], %s117
          %s119 = sand.u32 %s27, 1
          %s120 = scalar_lea.vmem [#allocation2], %s119
          %s122 = ssub.s32 16, 16
          %123 = vsyncadd %s118, %s122
          %s124 = smul.addr %s17, 16
          %s125 = scalar_lea.hbm %s0, %s124
          %s127 = sshll.u32 %s120, 4
          %s128 = int_to_ptr.vmem [resolvable:$true] %s127
          %130 = dma.hbm_to_vmem [thread:$0]  %s125, 16, %s128, %s118
        $region20: #{tpu_custom_call.1} parent=15 // pred_fallthru
          _
        // Predicated region
        $region21: #{tpu_custom_call.1} parent=15 // pred_check
          %p131 = pneg %p63
        $region22: #{tpu_custom_call.1} parent=15 // pred_check_branch
          %133 = sbr.rel (%p131) target = $region24
        $region23: #{tpu_custom_call.1} parent=15 // pred_region
          %s134 = sand.u32 %s53, 1
          %s135 = scalar_lea.sflag [#allocation6], %s134
          %s136 = sand.u32 %s53, 1
          %s137 = smul.addr %s136, 8
          %s138 = scalar_lea.vmem [#allocation5], %s137
          %s140 = ssub.s32 128, 128
          %141 = vsyncadd %s135, %s140
          %s142 = smul.addr %s17, 128
          %s143 = scalar_lea.hbm %s1, %s142
          %s145 = sshll.u32 %s138, 4
          %s146 = int_to_ptr.vmem [resolvable:$true] %s145
          %148 = dma.hbm_to_vmem [thread:$0]  %s143, 128, %s146, %s135
        $region24: #{tpu_custom_call.1} parent=15 // pred_fallthru
          _
      $region16: #{tpu_custom_call.1} parent=5 // pred_fallthru
        _
      %p149 = scmp.le.s32.totalorder 1, %s17
      %p150 = scmp.lt.s32.totalorder %s17, 3
      %p151 = pnand %p149, %p150
      %p152 = pneg %p151
      // Predicated region
      $region25: #{tpu_custom_call.1} parent=5 // pred_check
        _
      $region26: #{tpu_custom_call.1} parent=5 // pred_check_branch
        %154 = sbr.rel (%p151) target = $region28
      $region27: #{tpu_custom_call.1} parent=5 // pred_region
        %s155 = ssub.s32 %s17, 1
        %s156 = sand.u32 %s30, 1
        %s157 = scalar_lea.sflag [#allocation3], %s156
        %s158 = sand.u32 %s30, 1
        %s159 = scalar_lea.vmem [#allocation2], %s158
        // Predicated region
        $region29: #{tpu_custom_call.1} parent=27 // pred_check
          %p160 = pneg %p43
        $region30: #{tpu_custom_call.1} parent=27 // pred_check_branch
          %162 = sbr.rel (%p160) target = $region32
        $region31: #{tpu_custom_call.1} parent=27 // pred_region
          %163 = dma.done %s157, 16
        $region32: #{tpu_custom_call.1} parent=27 // pred_fallthru
          _
        %s164 = sand.u32 %s56, 1
        %s165 = scalar_lea.sflag [#allocation6], %s164
        %s166 = sand.u32 %s56, 1
        %s167 = smul.addr %s166, 8
        %s168 = scalar_lea.vmem [#allocation5], %s167
        // Predicated region
        $region33: #{tpu_custom_call.1} parent=27 // pred_check
          %p169 = pneg %p69
        $region34: #{tpu_custom_call.1} parent=27 // pred_check_branch
          %171 = sbr.rel (%p169) target = $region36
        $region35: #{tpu_custom_call.1} parent=27 // pred_region
          %172 = dma.done %s165, 128
        $region36: #{tpu_custom_call.1} parent=27 // pred_fallthru
          _
        %s173 = sand.u32 %s30, 1
        %s174 = scalar_lea.sflag [#allocation3], %s173
        %s175 = sand.u32 %s30, 1
        %s176 = scalar_lea.vmem [#allocation2], %s175
        %p177 = pneg %p43
        %p178 = pneg %p40
        %s179 = sand.u32 %s56, 1
        %s180 = scalar_lea.sflag [#allocation6], %s179
        %s181 = sand.u32 %s56, 1
        %s182 = smul.addr %s181, 8
        %s183 = scalar_lea.vmem [#allocation5], %s182
        %p184 = pneg %p69
        %p185 = pneg %p66
        %p186 = pneg %p95
        %p187 = pneg %p92
        %s188 = sand.u32 %s82, 1
        %s189 = scalar_lea.sflag [#allocation4], %s188
        %s190 = sand.u32 %s82, 1
        %s191 = smul.addr %s190, 16
        %s192 = scalar_lea.vmem [#allocation7], %s191
        %v193 = vld [vmem:[%s159] sm:$0x1]
        %v194 = vlaneseq
        %v195 = vshrl.u32 %v194, 7
        %v196 = vadd.s32 %v195, 8
        %v197 = vlaneseq
        %v198 = vshrl.u32 %v197, 7
        %v199 = vsub.s32 0, %v198
        %v200 = vrot.slane %v193, %v199
        %vm201 = vcmp.eq.s32.totalorder %v195, %v200
        %vm202 = vcmp.eq.s32.totalorder %v196, %v200
        %v203 = vsel %vm201, 1, 0
        %v204 = vsel %vm202, 1, 0
        %v205 = vcvt.s32.f32 %v203
        %v206 = vcvt.s32.f32 %v204
        %v207 = vld [vmem:[%s168] sm:$0xff]
        %vm208 = vcmask 64512
        %v210 = vsel %vm208, %v205, 0
        %v213 = vsel %vm208, %v206, 0
        %215 = vmatprep.subr.mxu0 0.0
        %216 = vmatpush1.msra.mxu0 %v207
        %217 = vmatprep.subr.mxu0 0.0
        %218 = vmatpush1.msra.mxu0 0.0
        %219 = vmatprep.subr.mxu0 0.0
        %220 = vmatpush1.msra.mxu0 0.0
        %221 = vmatprep.subr.mxu0 0.0
        %222 = vmatpush1.msra.mxu0 0.0
        %223 = vmatprep.subr.mxu0 0.0
        %224 = vmatpush1.msra.mxu0 0.0
        %225 = vmatprep.subr.mxu0 0.0
        %226 = vmatpush1.msra.mxu0 0.0
        %227 = vmatprep.subr.mxu0 0.0
        %228 = vmatpush1.msra.mxu0 0.0
        %229 = vmatprep.subr.mxu0 0.0
        %230 = vmatpush1.msra.mxu0 0.0
        %231 = vmatprep.subr.mxu0 0.0
        %232 = vmatpush1.msra.mxu0 0.0
        %233 = vmatprep.subr.mxu0 0.0
        %234 = vmatpush1.msra.mxu0 0.0
        %235 = vmatprep.subr.mxu0 0.0
        %236 = vmatpush1.msra.mxu0 0.0
        %237 = vmatprep.subr.mxu0 0.0
        %238 = vmatpush1.msra.mxu0 0.0
        %239 = vmatprep.subr.mxu0 0.0
        %240 = vmatpush1.msra.mxu0 0.0
        %241 = vmatprep.subr.mxu0 0.0
        %242 = vmatpush1.msra.mxu0 0.0
        %243 = vmatprep.subr.mxu0 0.0
        %244 = vmatpush1.msra.mxu0 0.0
        %245 = vmatprep.subr.mxu0 0.0
        %246 = vmatpush1.msra.mxu0 0.0
        %247 = vmatprep.subr.mxu0 0.0
        %248 = vmatpush1.msra.mxu0 0.0
        %249 = vmatprep.subr.mxu0 0.0
        %250 = vmatpush1.msra.mxu0 0.0
        %251 = vmatprep.subr.mxu0 0.0
        %252 = vmatpush1.msra.mxu0 0.0
        %253 = vmatprep.subr.mxu0 0.0
        %254 = vmatpush1.msra.mxu0 0.0
        %255 = vmatprep.subr.mxu0 0.0
        %256 = vmatpush1.msra.mxu0 0.0
        %257 = vmatprep.subr.mxu0 0.0
        %258 = vmatpush1.msra.mxu0 0.0
        %259 = vmatprep.subr.mxu0 0.0
        %260 = vmatpush1.msra.mxu0 0.0
        %261 = vmatprep.subr.mxu0 0.0
        %262 = vmatpush1.msra.mxu0 0.0
        %263 = vmatprep.subr.mxu0 0.0
        %264 = vmatpush1.msra.mxu0 0.0
        %265 = vmatprep.subr.mxu0 0.0
        %266 = vmatpush1.msra.mxu0 0.0
        %267 = vmatprep.subr.mxu0 0.0
        %268 = vmatpush1.msra.mxu0 0.0
        %269 = vmatprep.subr.mxu0 0.0
        %270 = vmatpush1.msra.mxu0 0.0
        %271 = vmatprep.subr.mxu0 0.0
        %272 = vmatpush1.msra.mxu0 0.0
        %273 = vmatprep.subr.mxu0 0.0
        %274 = vmatpush1.msra.mxu0 0.0
        %275 = vmatprep.subr.mxu0 0.0
        %276 = vmatpush1.msra.mxu0 0.0
        %277 = vmatprep.subr.mxu0 0.0
        %278 = vmatpush1.msra.mxu0 0.0
        %279 = vmatprep.mubr.f32.mxu0 0.0
        %280 = vmatmul.mubr.f32.gmra.mrb[0].mxu0 %v210
        %v281 = vpop.f32.mrb[0].mxu0
        %v282 = vadd.f32 0.0, %v281
        %v283 = vpop.f32.mrb[0].mxu0
        %284 = vmatprep.mubr.f32.mxu0 0.0
        %285 = vmatmul.mubr.f32.gmra.mrb[0].mxu0 %v213
        %v286 = vpop.f32.mrb[0].mxu0
        %v287 = vadd.f32 0.0, %v286
        %v288 = vpop.f32.mrb[0].mxu0
        %289 = vdwg.mxu0
        %290 = vst [vmem:[%s192] sm:$0xff] %v282
        %291 = vst [vmem:[%s192 + $0x8] sm:$0xff] %v287
        %s292 = sand.u32 %s82, 1
        %s293 = scalar_lea.sflag [#allocation4], %s292
        %s294 = sand.u32 %s82, 1
        %s295 = smul.addr %s294, 16
        %s296 = scalar_lea.vmem [#allocation7], %s295
        // Predicated region
        $region37: #{tpu_custom_call.1} parent=27 // pred_check
          %p297 = pneg %p92
        $region38: #{tpu_custom_call.1} parent=27 // pred_check_branch
          %299 = sbr.rel (%p297) target = $region40
        $region39: #{tpu_custom_call.1} parent=27 // pred_region
          %s301 = ssub.s32 256, 256
          %302 = vsyncadd %s293, %s301
          %s303 = smul.addr %s22, 2
          %s304 = smul.addr %s303, 128
          %s305 = scalar_lea.hbm %s2, %s304
          %s306 = sshll.u32 %s296, 4
          %s307 = int_to_ptr.vmem [resolvable:$true] %s306
          %312 = dma.vmem_to_hbm [thread:$0]  %s307, 256, %s305, %s293, 128, 128, 8
        $region40: #{tpu_custom_call.1} parent=27 // pred_fallthru
          _
      $region28: #{tpu_custom_call.1} parent=5 // pred_fallthru
        _
      %p313 = scmp.le.s32.totalorder 2, %s17
      // Predicated region
      $region41: #{tpu_custom_call.1} parent=5 // pred_check
        %p314 = pneg %p313
      $region42: #{tpu_custom_call.1} parent=5 // pred_check_branch
        %316 = sbr.rel (%p314) target = $region44
      $region43: #{tpu_custom_call.1} parent=5 // pred_region
        %s317 = ssub.s32 %s17, 2
        // Predicated region
        $region45: #{tpu_custom_call.1} parent=43 // pred_check
          %p318 = pneg %p98
        $region46: #{tpu_custom_call.1} parent=43 // pred_check_branch
          %320 = sbr.rel (%p318) target = $region48
        $region47: #{tpu_custom_call.1} parent=43 // pred_region
          %s321 = sand.u32 %s83, 1
          %s322 = scalar_lea.sflag [#allocation4], %s321
          %s323 = sand.u32 %s83, 1
          %s324 = smul.addr %s323, 16
          %s325 = scalar_lea.vmem [#allocation7], %s324
          %326 = dma.done %s322, 256
        $region48: #{tpu_custom_call.1} parent=43 // pred_fallthru
          _
      $region44: #{tpu_custom_call.1} parent=5 // pred_fallthru
        _
    $region6: #{tpu_custom_call.1} parent=1 // loop_footer
      %s21 = sadd.s32 1, %s17
    $region7: #{tpu_custom_call.1} parent=1 // loop_footer_branch
      %16 = sbr.rel target = $region3
    $region8: #{tpu_custom_call.1} parent=1 // loop_exit
      _
    %327 = vsyncpa [#allocation3], 1
    %s328 = scalar_lea.sflag [#allocation3], 1
    %329 = vsyncpa %s328, 1
    %330 = vsyncpa [#allocation6], 1
    %s331 = scalar_lea.sflag [#allocation6], 1
    %332 = vsyncpa %s331, 1
    %333 = vsyncpa [#allocation4], 1
    %s334 = scalar_lea.sflag [#allocation4], 1
    %335 = vsyncpa %s334, 1

</llo_original>
